<compile_context>
chip_gen: v7x
topology: tpu7x:2x2x1
jax: 0.10.0
libtpu: 0.0.40
codegen_flags: <defaults>
</compile_context>

<pallas_src>
import functools

import jax
import jax.numpy as jnp
from jax.experimental import pallas as pl
from jax.experimental.pallas import tpu as pltpu


def _round_up(x, m):
    return ((x + m - 1) // m) * m


def _mlp_kernel(x1_ref, x2_ref, w1_ref, b1_ref, w2_ref, b2_ref,
                out1_ref, out2_ref, *, use_bf16_matmul):
    # Elementwise add of the two positional inputs in f32 (VPU; v5e has no
    # bf16 VALU, so keep elementwise math in f32 regardless of the dot dtype).
    x = x1_ref[...] + x2_ref[...]

    if use_bf16_matmul:
        x_d = x.astype(jnp.bfloat16)
        w1 = w1_ref[...].astype(jnp.bfloat16)
    else:
        x_d = x
        w1 = w1_ref[...]

    # fc1 + ReLU (MXU matmul, f32 accumulation).  H lanes are 128-padded so
    # bias add / ReLU / store are full-lane, unmasked ops.
    h = jnp.dot(x_d, w1, preferred_element_type=jnp.float32)
    h = jnp.maximum(h + b1_ref[...], 0.0)          # b1 is (1, H_pad) -> broadcast
    out1_ref[...] = h.astype(out1_ref.dtype)

    # fc2 consumes out1 (the dependency between the two outputs).
    if use_bf16_matmul:
        h_d = h.astype(jnp.bfloat16)
        w2 = w2_ref[...].astype(jnp.bfloat16)
    else:
        h_d = h
        w2 = w2_ref[...]
    o2 = jnp.dot(h_d, w2, preferred_element_type=jnp.float32)
    out2_ref[...] = (o2 + b2_ref[...]).astype(out2_ref.dtype)


def prepare_params(w1, b1, w2, b2):
    """Pad weights/biases lane-dense (output dims -> multiples of 128).

    Call this ONCE at init time (the padded params are call-invariant) and
    reuse the result across forward calls.  Zero padding is mathematically
    inert: padded W1 columns + zero bias give relu(0)=0 in out1's padded
    lanes, which then contribute nothing to fc2.

    w1: [input_size, hidden]; b1: [hidden] or [1, hidden];
    w2: [hidden, num_classes]; b2: [num_classes] or [1, num_classes].
    (PyTorch Linear stores [out, in]; weights here are stored pre-transposed.)
    """
    K, H = w1.shape
    C = w2.shape[1]
    H_pad = _round_up(H, 128)
    C_pad = _round_up(C, 128)
    f32 = jnp.float32
    w1p = jnp.zeros((K, H_pad), f32).at[:, :H].set(w1.astype(f32))
    b1p = jnp.zeros((1, H_pad), f32).at[:, :H].set(b1.reshape(1, -1).astype(f32))
    w2p = jnp.zeros((H_pad, C_pad), f32).at[:H, :C].set(w2.astype(f32))
    b2p = jnp.zeros((1, C_pad), f32).at[:, :C].set(b2.reshape(1, -1).astype(f32))
    return (w1p, b1p, w2p, b2p, H, C)


def mlp_forward(input1, input2, params, *, tile_b=512, use_bf16_matmul=False):
    """input1/input2: [B, input_size]; params: output of prepare_params()."""
    w1p, b1p, w2p, b2p, H, C = params
    B, K = input1.shape
    H_pad = w1p.shape[1]
    C_pad = w2p.shape[1]

    # Batch tile: large for real workloads (better HBM-roofline fraction),
    # clamped for tiny demo batches.  Multiple of 8 keeps the (8,128) block
    # constraint satisfied; the ragged last tile is handled by Pallas.
    tile_b = min(tile_b, _round_up(B, 8))
    grid = (pl.cdiv(B, tile_b),)

    f32 = jnp.float32
    x1 = input1.astype(f32)
    x2 = input2.astype(f32)

    # VMEM budget: single-buffered resident weights + double-buffered
    # activation/output tiles, with headroom.  Clamped to [32, 64] MiB so it
    # is valid on v5e/v6e (128 MiB) and v7x (64 MiB).
    weight_bytes = 4 * (K * H_pad + H_pad + H_pad * C_pad + C_pad)
    io_bytes = 4 * 2 * (2 * tile_b * K + tile_b * H_pad + tile_b * C_pad)
    vmem_limit = int(min(max((weight_bytes + io_bytes) * 3 // 2 + (4 << 20),
                             32 << 20), 64 << 20))

    grid_spec = pltpu.PrefetchScalarGridSpec(
        num_scalar_prefetch=0,
        grid=grid,
        in_specs=[
            # Activation tiles: marched over the batch grid (double-buffered).
            # Lane dim = K = full array dim (no per-call padding copy).
            pl.BlockSpec((tile_b, K), lambda i: (i, 0)),
            pl.BlockSpec((tile_b, K), lambda i: (i, 0)),
            # Weights / biases: constant block index -> VMEM-resident, single
            # buffer (Buffered(1)), one DMA for the whole call.
            pl.BlockSpec((K, H_pad), lambda i: (0, 0),
                         pipeline_mode=pl.Buffered(1)),
            pl.BlockSpec((1, H_pad), lambda i: (0, 0),
                         pipeline_mode=pl.Buffered(1)),
            pl.BlockSpec((H_pad, C_pad), lambda i: (0, 0),
                         pipeline_mode=pl.Buffered(1)),
            pl.BlockSpec((1, C_pad), lambda i: (0, 0),
                         pipeline_mode=pl.Buffered(1)),
        ],
        out_specs=[
            # Lane-dense (128-padded) output tiles -> unmasked full-lane stores.
            pl.BlockSpec((tile_b, H_pad), lambda i: (i, 0)),
            pl.BlockSpec((tile_b, C_pad), lambda i: (i, 0)),
        ],
    )

    flops = 2 * B * (K * H_pad + H_pad * C_pad)
    bytes_accessed = 4 * (
        2 * B * K                          # x1, x2
        + K * H_pad + H_pad                # w1, b1
        + H_pad * C_pad + C_pad            # w2, b2
        + B * H_pad + B * C_pad            # out1, out2
    )

    kernel = functools.partial(_mlp_kernel, use_bf16_matmul=use_bf16_matmul)

    out1_p, out2_p = pl.pallas_call(
        kernel,
        out_shape=(
            jax.ShapeDtypeStruct((B, H_pad), f32),
            jax.ShapeDtypeStruct((B, C_pad), f32),
        ),
        grid_spec=grid_spec,
        compiler_params=pltpu.CompilerParams(
            dimension_semantics=("parallel",),
            vmem_limit_bytes=vmem_limit,
        ),
        cost_estimate=pl.CostEstimate(
            flops=flops, transcendentals=0, bytes_accessed=bytes_accessed),
    )(x1, x2, w1p, b1p, w2p, b2p)

    # Strip lane padding back to the logical shapes.
    return out1_p[:, :H], out2_p[:, :C]


def init_params(key, input_size, hidden_size, num_classes):
    """Deterministic synthetic init (mirrors PyTorch Linear shapes, stored transposed)."""
    k1, k2, k3, k4 = jax.random.split(key, 4)
    bound1 = 1.0 / jnp.sqrt(input_size)
    bound2 = 1.0 / jnp.sqrt(hidden_size)
    w1 = jax.random.uniform(k1, (input_size, hidden_size), jnp.float32, -bound1, bound1)
    b1 = jax.random.uniform(k2, (1, hidden_size), jnp.float32, -bound1, bound1)
    w2 = jax.random.uniform(k3, (hidden_size, num_classes), jnp.float32, -bound2, bound2)
    b2 = jax.random.uniform(k4, (1, num_classes), jnp.float32, -bound2, bound2)
    return w1, b1, w2, b2


if __name__ == "__main__":
    # NOTE: at this toy size the kernel is pure launch latency; the tiling /
    # padding machinery above is what makes it scale to real batch sizes.
    batch, input_size, hidden_size, num_classes = 8, 32, 32, 16

    key = jax.random.PRNGKey(0)
    k_in1, k_in2, k_params = jax.random.split(key, 3)

    input1 = jax.random.normal(k_in1, (batch, input_size), jnp.float32)
    input2 = jax.random.normal(k_in2, (batch, input_size), jnp.float32)
    w1, b1, w2, b2 = init_params(k_params, input_size, hidden_size, num_classes)

    # Pad the call-invariant params once; reuse across forward calls.
    params = prepare_params(w1, b1, w2, b2)

    out1, out2 = mlp_forward(input1, input2, params)
    jax.block_until_ready((out1, out2))

    # Pure-JAX reference check.
    x = input1 + input2
    ref1 = jnp.maximum(x @ w1 + b1, 0.0)
    ref2 = ref1 @ w2 + b2
    assert out1.shape == (batch, hidden_size) and out2.shape == (batch, num_classes)
    assert jnp.allclose(out1, ref1, atol=1e-5, rtol=1e-5)
    assert jnp.allclose(out2, ref2, atol=1e-5, rtol=1e-5)

    print("KERNEL_OK")
</pallas_src>

<mosaic_0001>
module attributes {stable_mosaic.version = 11 : i64} {
  func.func @_mlp_kernel(%arg0: i32, %arg1: memref<8x32xf32, #tpu.memory_space<vmem>>, %arg2: memref<8x32xf32, #tpu.memory_space<vmem>>, %arg3: memref<32x128xf32, #tpu.memory_space<vmem>>, %arg4: memref<1x128xf32, #tpu.memory_space<vmem>>, %arg5: memref<128x128xf32, #tpu.memory_space<vmem>>, %arg6: memref<1x128xf32, #tpu.memory_space<vmem>>, %arg7: memref<8x128xf32, #tpu.memory_space<vmem>>, %arg8: memref<8x128xf32, #tpu.memory_space<vmem>>) attributes {dimension_semantics = [#tpu.dimension_semantics<parallel>], iteration_bounds = array<i64: 1>, scalar_prefetch = 0 : i64, scratch_operands = 0 : i64, tpu.core_type = #tpu.core_type<tc>, window_params = [{transform_indices = @transform_0, window_bounds = array<i64: 8, 32>}, {transform_indices = @transform_1, window_bounds = array<i64: 8, 32>}, {pipeline_mode = #tpu.pipeline_mode<synchronous>, transform_indices = @transform_2, window_bounds = array<i64: 32, 128>}, {pipeline_mode = #tpu.pipeline_mode<synchronous>, transform_indices = @transform_3, window_bounds = array<i64: 1, 128>}, {pipeline_mode = #tpu.pipeline_mode<synchronous>, transform_indices = @transform_4, window_bounds = array<i64: 128, 128>}, {pipeline_mode = #tpu.pipeline_mode<synchronous>, transform_indices = @transform_5, window_bounds = array<i64: 1, 128>}, {transform_indices = @transform_6, window_bounds = array<i64: 8, 128>}, {transform_indices = @transform_7, window_bounds = array<i64: 8, 128>}]} {
    %c0 = arith.constant 0 : index
    %c0_0 = arith.constant 0 : index
    %0 = vector.load %arg1[%c0, %c0_0] : memref<8x32xf32, #tpu.memory_space<vmem>>, vector<8x32xf32>
    %c0_1 = arith.constant 0 : index
    %c0_2 = arith.constant 0 : index
    %1 = vector.load %arg2[%c0_1, %c0_2] : memref<8x32xf32, #tpu.memory_space<vmem>>, vector<8x32xf32>
    %2 = arith.addf %0, %1 : vector<8x32xf32>
    %c0_3 = arith.constant 0 : index
    %c0_4 = arith.constant 0 : index
    %3 = vector.load %arg3[%c0_3, %c0_4] : memref<32x128xf32, #tpu.memory_space<vmem>>, vector<32x128xf32>
    %cst = arith.constant dense<0.000000e+00> : vector<8x128xf32>
    %4 = tpu.matmul %2, %3, %cst {dimension_numbers = #tpu.dot_dimension_numbers<[1], [0], [0], [1], [0, 0, 1, 1], [], []>} : vector<8x32xf32>, vector<32x128xf32>, vector<8x128xf32> -> vector<8x128xf32>
    %c0_5 = arith.constant 0 : index
    %c0_6 = arith.constant 0 : index
    %5 = vector.load %arg4[%c0_5, %c0_6] : memref<1x128xf32, #tpu.memory_space<vmem>>, vector<1x128xf32>
    %6 = vector.broadcast %5 : vector<1x128xf32> to vector<8x128xf32>
    %7 = arith.addf %4, %6 : vector<8x128xf32>
    %cst_7 = arith.constant 0.000000e+00 : f32
    %8 = vector.broadcast %cst_7 : f32 to vector<8x128xf32>
    %9 = arith.maximumf %7, %8 : vector<8x128xf32>
    %c0_8 = arith.constant 0 : index
    %c0_9 = arith.constant 0 : index
    %10 = vector.load %arg7[%c0_8, %c0_9] : memref<8x128xf32, #tpu.memory_space<vmem>>, vector<8x128xf32>
    tpu.vector_store %arg7[%c0_8, %c0_9], %9 {strides = array<i32>} : memref<8x128xf32, #tpu.memory_space<vmem>>, vector<8x128xf32>,
    %c0_10 = arith.constant 0 : index
    %c0_11 = arith.constant 0 : index
    %11 = vector.load %arg5[%c0_10, %c0_11] : memref<128x128xf32, #tpu.memory_space<vmem>>, vector<128x128xf32>
    %cst_12 = arith.constant dense<0.000000e+00> : vector<8x128xf32>
    %12 = tpu.matmul %9, %11, %cst_12 {dimension_numbers = #tpu.dot_dimension_numbers<[1], [0], [0], [1], [0, 0, 1, 1], [], []>} : vector<8x128xf32>, vector<128x128xf32>, vector<8x128xf32> -> vector<8x128xf32>
    %c0_13 = arith.constant 0 : index
    %c0_14 = arith.constant 0 : index
    %13 = vector.load %arg6[%c0_13, %c0_14] : memref<1x128xf32, #tpu.memory_space<vmem>>, vector<1x128xf32>
    %14 = vector.broadcast %13 : vector<1x128xf32> to vector<8x128xf32>
    %15 = arith.addf %12, %14 : vector<8x128xf32>
    %c0_15 = arith.constant 0 : index
    %c0_16 = arith.constant 0 : index
    %16 = vector.load %arg8[%c0_15, %c0_16] : memref<8x128xf32, #tpu.memory_space<vmem>>, vector<8x128xf32>
    tpu.vector_store %arg8[%c0_15, %c0_16], %15 {strides = array<i32>} : memref<8x128xf32, #tpu.memory_space<vmem>>, vector<8x128xf32>,
    return
  }
  func.func @transform_0(%arg0: i32) -> (i32, i32) {
    %c0_i32 = arith.constant 0 : i32
    %c0_i32_0 = arith.constant 0 : i32
    return %arg0, %c0_i32 : i32, i32
  }
  func.func @transform_1(%arg0: i32) -> (i32, i32) {
    %c0_i32 = arith.constant 0 : i32
    %c0_i32_0 = arith.constant 0 : i32
    return %arg0, %c0_i32 : i32, i32
  }
  func.func @transform_2(%arg0: i32) -> (i32, i32) {
    %c0_i32 = arith.constant 0 : i32
    %c0_i32_0 = arith.constant 0 : i32
    %c0_i32_1 = arith.constant 0 : i32
    return %c0_i32, %c0_i32_0 : i32, i32
  }
  func.func @transform_3(%arg0: i32) -> (i32, i32) {
    %c0_i32 = arith.constant 0 : i32
    %c0_i32_0 = arith.constant 0 : i32
    %c0_i32_1 = arith.constant 0 : i32
    return %c0_i32, %c0_i32_0 : i32, i32
  }
  func.func @transform_4(%arg0: i32) -> (i32, i32) {
    %c0_i32 = arith.constant 0 : i32
    %c0_i32_0 = arith.constant 0 : i32
    %c0_i32_1 = arith.constant 0 : i32
    return %c0_i32, %c0_i32_0 : i32, i32
  }
  func.func @transform_5(%arg0: i32) -> (i32, i32) {
    %c0_i32 = arith.constant 0 : i32
    %c0_i32_0 = arith.constant 0 : i32
    %c0_i32_1 = arith.constant 0 : i32
    return %c0_i32, %c0_i32_0 : i32, i32
  }
  func.func @transform_6(%arg0: i32) -> (i32, i32) {
    %c0_i32 = arith.constant 0 : i32
    %c0_i32_0 = arith.constant 0 : i32
    return %arg0, %c0_i32 : i32, i32
  }
  func.func @transform_7(%arg0: i32) -> (i32, i32) {
    %c0_i32 = arith.constant 0 : i32
    %c0_i32_0 = arith.constant 0 : i32
    return %arg0, %c0_i32 : i32, i32
  }
}

</mosaic_0001>

<llo_original>
// kernel: tpu_custom_call.1
$region0: #{tpu_custom_call.1}
  #allocation0 [shape = 'u32[]', space=smem, size = 0x4, offset = 0x4, fixed_abs, tag = 'smem constant byte address 0x4 - core index']
  #allocation1 [shape = 'u32[144,128]{1,0:T(1,128)}', space=vmem, size = 0x12000, scoped, tag = 'internal scratch']
  %s0 = inlined_call_operand.hbm [shape: f32[8,32], index: 0, kind: input, shape index: {}]
  %s1 = inlined_call_operand.hbm [shape: f32[8,32], index: 1, kind: input, shape index: {}]
  %s2 = inlined_call_operand.hbm [shape: f32[32,128], index: 2, kind: input, shape index: {}]
  %s3 = inlined_call_operand.vmem [shape: f32[1,128], index: 3, kind: input, shape index: {}]
  %s4 = inlined_call_operand.hbm [shape: f32[128,128], index: 4, kind: input, shape index: {}]
  %s5 = inlined_call_operand.vmem [shape: f32[1,128], index: 5, kind: input, shape index: {}]
  %s6 = inlined_call_operand.hbm [shape: f32[8,128], index: 6, kind: output, shape index: {0}]
  %s7 = inlined_call_operand.hbm [shape: f32[8,128], index: 7, kind: output, shape index: {1}]
  %8 = xla_tuple %s6, %s7
  %s9 = sld [smem:[#allocation0]]
  $region58: #{tpu_custom_call.1} parent=0
    _
  %s11 = ssub.s32 1, %s9
  %s12 = scalar_select 0, %s11, %s9
  $region1: #{tpu_custom_call.1} parent=0
    #allocation2 [shape = 'u8[4096]{0}', space=vmem, size = 0x1000, scoped, tag = 'input window, operand 0, single buffered']
    #allocation3 [shape = 's32[1]{0}', space=sflag, size = 0x4, scoped, tag = 'scoped memory for tpu_custom_call.1']
    #allocation4 [shape = 's32[1]{0}', space=sflag, size = 0x4, scoped, tag = 'scoped memory for tpu_custom_call.1']
    #allocation5 [shape = 'u8[4096]{0}', space=vmem, size = 0x1000, scoped, tag = 'input window, operand 1, single buffered']
    #allocation6 [shape = 's32[1]{0}', space=sflag, size = 0x4, scoped, tag = 'scoped memory for tpu_custom_call.1']
    #allocation7 [shape = 'u8[16384]{0}', space=vmem, size = 0x4000, scoped, tag = 'input window, operand 2, single buffered']
    #allocation8 [shape = 'u8[65536]{0}', space=vmem, size = 0x10000, scoped, tag = 'input window, operand 4, single buffered']
    #allocation9 [shape = 's32[1]{0}', space=sflag, size = 0x4, scoped, tag = 'scoped memory for tpu_custom_call.1']
    #allocation10 [shape = 'u8[4096]{0}', space=vmem, size = 0x1000, scoped, tag = 'output window, operand 0, single buffered']
    #allocation11 [shape = 'u8[4096]{0}', space=vmem, size = 0x1000, scoped, tag = 'output window, operand 1, single buffered']
    #allocation12 [shape = 's32[1]{0}', space=sflag, size = 0x4, scoped, tag = 'scoped memory for tpu_custom_call.1']
    %13 = vsyncpa [#allocation3], 0
    %14 = vsyncpa [#allocation6], 0
    %15 = vsyncpa [#allocation9], 0
    %16 = vsyncpa [#allocation4], 0
    %17 = vsyncpa [#allocation12], 0
    // Predicated region
    $region2: #{tpu_custom_call.1} parent=1 // pred_check
      _
    $region3: #{tpu_custom_call.1} parent=1 // pred_check_branch
      %19 = sbr.rel (0) target = $region5
    $region4: #{tpu_custom_call.1} parent=1 // pred_region
      %s21 = ssub.s32 128, 128
      %22 = vsyncadd [#allocation3], %s21
      %s24 = sshll.u32 [#allocation2], 4
      %s25 = int_to_ptr.vmem [resolvable:$true] %s24
      %27 = dma.hbm_to_vmem [thread:$0]  %s0, 128, %s25, [#allocation3]
    $region5: #{tpu_custom_call.1} parent=1 // pred_fallthru
      _
    // Predicated region
    $region6: #{tpu_custom_call.1} parent=1 // pred_check
      _
    $region7: #{tpu_custom_call.1} parent=1 // pred_check_branch
      %29 = sbr.rel (0) target = $region9
    $region8: #{tpu_custom_call.1} parent=1 // pred_region
      %s31 = ssub.s32 128, 128
      %32 = vsyncadd [#allocation6], %s31
      %s34 = sshll.u32 [#allocation5], 4
      %s35 = int_to_ptr.vmem [resolvable:$true] %s34
      %37 = dma.hbm_to_vmem [thread:$0]  %s1, 128, %s35, [#allocation6]
    $region9: #{tpu_custom_call.1} parent=1 // pred_fallthru
      _
    // Predicated region
    $region10: #{tpu_custom_call.1} parent=1 // pred_check
      _
    $region11: #{tpu_custom_call.1} parent=1 // pred_check_branch
      %39 = sbr.rel (0) target = $region13
    $region12: #{tpu_custom_call.1} parent=1 // pred_region
      %s41 = ssub.s32 512, 512
      %42 = vsyncadd [#allocation6], %s41
      %s43 = sshll.u32 [#allocation7], 4
      %s44 = int_to_ptr.vmem [resolvable:$true] %s43
      %49 = dma.hbm_to_vmem [thread:$0]  %s2, 512, %s44, [#allocation6], 128, 128, 8
    $region13: #{tpu_custom_call.1} parent=1 // pred_fallthru
      _
    // Predicated region
    $region14: #{tpu_custom_call.1} parent=1 // pred_check
      _
    $region15: #{tpu_custom_call.1} parent=1 // pred_check_branch
      %51 = sbr.rel (0) target = $region17
    $region16: #{tpu_custom_call.1} parent=1 // pred_region
      _
    $region17: #{tpu_custom_call.1} parent=1 // pred_fallthru
      _
    // Predicated region
    $region18: #{tpu_custom_call.1} parent=1 // pred_check
      _
    $region19: #{tpu_custom_call.1} parent=1 // pred_check_branch
      %53 = sbr.rel (0) target = $region21
    $region20: #{tpu_custom_call.1} parent=1 // pred_region
      %s55 = ssub.s32 2048, 2048
      %56 = vsyncadd [#allocation9], %s55
      %s57 = sshll.u32 [#allocation8], 4
      %s58 = int_to_ptr.vmem [resolvable:$true] %s57
      %63 = dma.hbm_to_vmem [thread:$0]  %s4, 2048, %s58, [#allocation9], 128, 128, 8
    $region21: #{tpu_custom_call.1} parent=1 // pred_fallthru
      _
    // Predicated region
    $region22: #{tpu_custom_call.1} parent=1 // pred_check
      _
    $region23: #{tpu_custom_call.1} parent=1 // pred_check_branch
      %65 = sbr.rel (0) target = $region25
    $region24: #{tpu_custom_call.1} parent=1 // pred_region
      _
    $region25: #{tpu_custom_call.1} parent=1 // pred_fallthru
      _
    // Predicated region
    $region26: #{tpu_custom_call.1} parent=1 // pred_check
      _
    $region27: #{tpu_custom_call.1} parent=1 // pred_check_branch
      %67 = sbr.rel (0) target = $region29
    $region28: #{tpu_custom_call.1} parent=1 // pred_region
      %68 = dma.done [#allocation3], 128
    $region29: #{tpu_custom_call.1} parent=1 // pred_fallthru
      _
    // Predicated region
    $region30: #{tpu_custom_call.1} parent=1 // pred_check
      _
    $region31: #{tpu_custom_call.1} parent=1 // pred_check_branch
      %70 = sbr.rel (0) target = $region33
    $region32: #{tpu_custom_call.1} parent=1 // pred_region
      %71 = dma.done [#allocation6], 128
    $region33: #{tpu_custom_call.1} parent=1 // pred_fallthru
      _
    // Predicated region
    $region34: #{tpu_custom_call.1} parent=1 // pred_check
      _
    $region35: #{tpu_custom_call.1} parent=1 // pred_check_branch
      %73 = sbr.rel (0) target = $region37
    $region36: #{tpu_custom_call.1} parent=1 // pred_region
      %74 = dma.done [#allocation6], 512
    $region37: #{tpu_custom_call.1} parent=1 // pred_fallthru
      _
    // Predicated region
    $region38: #{tpu_custom_call.1} parent=1 // pred_check
      _
    $region39: #{tpu_custom_call.1} parent=1 // pred_check_branch
      %76 = sbr.rel (0) target = $region41
    $region40: #{tpu_custom_call.1} parent=1 // pred_region
      %77 = dma.done [#allocation9], 2048
    $region41: #{tpu_custom_call.1} parent=1 // pred_fallthru
      _
    %v78 = vld [vmem:[#allocation2] sm:$0xff]
    %v79 = vld [vmem:[#allocation5] sm:$0xff]
    %v80 = vadd.f32 %v78, %v79
    %v81 = vld [vmem:[#allocation7] sm:$0xff]
    %v82 = vld [vmem:[#allocation7 + $0x8] sm:$0xff]
    %v83 = vld [vmem:[#allocation7 + $0x10] sm:$0xff]
    %v84 = vld [vmem:[#allocation7 + $0x18] sm:$0xff]
    %v85 = vld [vmem:[%s3] sm:$0x1]
    %v87 = vlaneseq
    %v88 = vshrl.u32 %v87, 7
    %v89 = vsub.s32 0, %v88
    %v90 = vrot.slane %v85, %v89
    %vm92 = vcmask 261120
    %v94 = vsel %vm92, %v80, 0
    %96 = vmatprep.subr.mxu0 0.0
    %97 = vmatpush1.msra.mxu0 %v81
    %98 = vmatprep.subr.mxu0 0.0
    %99 = vmatpush1.msra.mxu0 %v82
    %100 = vmatprep.subr.mxu0 0.0
    %101 = vmatpush1.msra.mxu0 %v83
    %102 = vmatprep.subr.mxu0 0.0
    %103 = vmatpush1.msra.mxu0 %v84
    %104 = vmatprep.subr.mxu0 0.0
    %105 = vmatpush1.msra.mxu0 0.0
    %106 = vmatprep.subr.mxu0 0.0
    %107 = vmatpush1.msra.mxu0 0.0
    %108 = vmatprep.subr.mxu0 0.0
    %109 = vmatpush1.msra.mxu0 0.0
    %110 = vmatprep.subr.mxu0 0.0
    %111 = vmatpush1.msra.mxu0 0.0
    %112 = vmatprep.subr.mxu0 0.0
    %113 = vmatpush1.msra.mxu0 0.0
    %114 = vmatprep.subr.mxu0 0.0
    %115 = vmatpush1.msra.mxu0 0.0
    %116 = vmatprep.subr.mxu0 0.0
    %117 = vmatpush1.msra.mxu0 0.0
    %118 = vmatprep.subr.mxu0 0.0
    %119 = vmatpush1.msra.mxu0 0.0
    %120 = vmatprep.subr.mxu0 0.0
    %121 = vmatpush1.msra.mxu0 0.0
    %122 = vmatprep.subr.mxu0 0.0
    %123 = vmatpush1.msra.mxu0 0.0
    %124 = vmatprep.subr.mxu0 0.0
    %125 = vmatpush1.msra.mxu0 0.0
    %126 = vmatprep.subr.mxu0 0.0
    %127 = vmatpush1.msra.mxu0 0.0
    %128 = vmatprep.subr.mxu0 0.0
    %129 = vmatpush1.msra.mxu0 0.0
    %130 = vmatprep.subr.mxu0 0.0
    %131 = vmatpush1.msra.mxu0 0.0
    %132 = vmatprep.subr.mxu0 0.0
    %133 = vmatpush1.msra.mxu0 0.0
    %134 = vmatprep.subr.mxu0 0.0
    %135 = vmatpush1.msra.mxu0 0.0
    %136 = vmatprep.subr.mxu0 0.0
    %137 = vmatpush1.msra.mxu0 0.0
    %138 = vmatprep.subr.mxu0 0.0
    %139 = vmatpush1.msra.mxu0 0.0
    %140 = vmatprep.subr.mxu0 0.0
    %141 = vmatpush1.msra.mxu0 0.0
    %142 = vmatprep.subr.mxu0 0.0
    %143 = vmatpush1.msra.mxu0 0.0
    %144 = vmatprep.subr.mxu0 0.0
    %145 = vmatpush1.msra.mxu0 0.0
    %146 = vmatprep.subr.mxu0 0.0
    %147 = vmatpush1.msra.mxu0 0.0
    %148 = vmatprep.subr.mxu0 0.0
    %149 = vmatpush1.msra.mxu0 0.0
    %150 = vmatprep.subr.mxu0 0.0
    %151 = vmatpush1.msra.mxu0 0.0
    %152 = vmatprep.subr.mxu0 0.0
    %153 = vmatpush1.msra.mxu0 0.0
    %154 = vmatprep.subr.mxu0 0.0
    %155 = vmatpush1.msra.mxu0 0.0
    %156 = vmatprep.subr.mxu0 0.0
    %157 = vmatpush1.msra.mxu0 0.0
    %158 = vmatprep.subr.mxu0 0.0
    %159 = vmatpush1.msra.mxu0 0.0
    %160 = vmatprep.mubr.f32.mxu0 0.0
    %161 = vmatmul.mubr.f32.gmra.mrb[0].mxu0 %v94
    %v162 = vpop.f32.mrb[0].mxu0
    %v163 = vadd.f32 %v90, %v162
    %v164 = vpop.f32.mrb[0].mxu0
    %165 = vdwg.mxu0
    %v166 = vmax.f32 %v163, 0.0
    %167 = vst [vmem:[#allocation10] sm:$0xff] %v166
    %v168 = vld [vmem:[#allocation8] sm:$0xff]
    %v169 = vld [vmem:[#allocation8 + $0x8] sm:$0xff]
    %v170 = vld [vmem:[#allocation8 + $0x10] sm:$0xff]
    %v171 = vld [vmem:[#allocation8 + $0x18] sm:$0xff]
    %v172 = vld [vmem:[#allocation8 + $0x20] sm:$0xff]
    %v173 = vld [vmem:[#allocation8 + $0x28] sm:$0xff]
    %v174 = vld [vmem:[#allocation8 + $0x30] sm:$0xff]
    %v175 = vld [vmem:[#allocation8 + $0x38] sm:$0xff]
    %v176 = vld [vmem:[#allocation8 + $0x40] sm:$0xff]
    %v177 = vld [vmem:[#allocation8 + $0x48] sm:$0xff]
    %v178 = vld [vmem:[#allocation8 + $0x50] sm:$0xff]
    %v179 = vld [vmem:[#allocation8 + $0x58] sm:$0xff]
    %v180 = vld [vmem:[#allocation8 + $0x60] sm:$0xff]
    %v181 = vld [vmem:[#allocation8 + $0x68] sm:$0xff]
    %v182 = vld [vmem:[#allocation8 + $0x70] sm:$0xff]
    %v183 = vld [vmem:[#allocation8 + $0x78] sm:$0xff]
    %v184 = vld [vmem:[%s5] sm:$0x1]
    %v186 = vlaneseq
    %v187 = vshrl.u32 %v186, 7
    %v188 = vsub.s32 0, %v187
    %v189 = vrot.slane %v184, %v188
    %191 = vmatprep.subr.mxu0 0.0
    %192 = vmatpush1.msra.mxu0 %v168
    %193 = vmatprep.subr.mxu0 0.0
    %194 = vmatpush1.msra.mxu0 %v169
    %195 = vmatprep.subr.mxu0 0.0
    %196 = vmatpush1.msra.mxu0 %v170
    %197 = vmatprep.subr.mxu0 0.0
    %198 = vmatpush1.msra.mxu0 %v171
    %199 = vmatprep.subr.mxu0 0.0
    %200 = vmatpush1.msra.mxu0 %v172
    %201 = vmatprep.subr.mxu0 0.0
    %202 = vmatpush1.msra.mxu0 %v173
    %203 = vmatprep.subr.mxu0 0.0
    %204 = vmatpush1.msra.mxu0 %v174
    %205 = vmatprep.subr.mxu0 0.0
    %206 = vmatpush1.msra.mxu0 %v175
    %207 = vmatprep.subr.mxu0 0.0
    %208 = vmatpush1.msra.mxu0 %v176
    %209 = vmatprep.subr.mxu0 0.0
    %210 = vmatpush1.msra.mxu0 %v177
    %211 = vmatprep.subr.mxu0 0.0
    %212 = vmatpush1.msra.mxu0 %v178
    %213 = vmatprep.subr.mxu0 0.0
    %214 = vmatpush1.msra.mxu0 %v179
    %215 = vmatprep.subr.mxu0 0.0
    %216 = vmatpush1.msra.mxu0 %v180
    %217 = vmatprep.subr.mxu0 0.0
    %218 = vmatpush1.msra.mxu0 %v181
    %219 = vmatprep.subr.mxu0 0.0
    %220 = vmatpush1.msra.mxu0 %v182
    %221 = vmatprep.subr.mxu0 0.0
    %222 = vmatpush1.msra.mxu0 %v183
    %223 = vmatprep.subr.mxu0 0.0
    %224 = vmatpush1.msra.mxu0 0.0
    %225 = vmatprep.subr.mxu0 0.0
    %226 = vmatpush1.msra.mxu0 0.0
    %227 = vmatprep.subr.mxu0 0.0
    %228 = vmatpush1.msra.mxu0 0.0
    %229 = vmatprep.subr.mxu0 0.0
    %230 = vmatpush1.msra.mxu0 0.0
    %231 = vmatprep.subr.mxu0 0.0
    %232 = vmatpush1.msra.mxu0 0.0
    %233 = vmatprep.subr.mxu0 0.0
    %234 = vmatpush1.msra.mxu0 0.0
    %235 = vmatprep.subr.mxu0 0.0
    %236 = vmatpush1.msra.mxu0 0.0
    %237 = vmatprep.subr.mxu0 0.0
    %238 = vmatpush1.msra.mxu0 0.0
    %239 = vmatprep.subr.mxu0 0.0
    %240 = vmatpush1.msra.mxu0 0.0
    %241 = vmatprep.subr.mxu0 0.0
    %242 = vmatpush1.msra.mxu0 0.0
    %243 = vmatprep.subr.mxu0 0.0
    %244 = vmatpush1.msra.mxu0 0.0
    %245 = vmatprep.subr.mxu0 0.0
    %246 = vmatpush1.msra.mxu0 0.0
    %247 = vmatprep.subr.mxu0 0.0
    %248 = vmatpush1.msra.mxu0 0.0
    %249 = vmatprep.subr.mxu0 0.0
    %250 = vmatpush1.msra.mxu0 0.0
    %251 = vmatprep.subr.mxu0 0.0
    %252 = vmatpush1.msra.mxu0 0.0
    %253 = vmatprep.subr.mxu0 0.0
    %254 = vmatpush1.msra.mxu0 0.0
    %255 = vmatprep.mubr.f32.mxu0 0.0
    %256 = vmatmul.mubr.f32.gmra.mrb[0].mxu0 %v166
    %v257 = vpop.f32.mrb[0].mxu0
    %v258 = vadd.f32 %v189, %v257
    %v259 = vpop.f32.mrb[0].mxu0
    %260 = vdwg.mxu0
    %261 = vst [vmem:[#allocation11] sm:$0xff] %v258
    // Predicated region
    $region42: #{tpu_custom_call.1} parent=1 // pred_check
      _
    $region43: #{tpu_custom_call.1} parent=1 // pred_check_branch
      %263 = sbr.rel (0) target = $region45
    $region44: #{tpu_custom_call.1} parent=1 // pred_region
      %s265 = ssub.s32 128, 128
      %266 = vsyncadd [#allocation4], %s265
      %s268 = sshll.u32 [#allocation10], 4
      %s269 = int_to_ptr.vmem [resolvable:$true] %s268
      %271 = dma.vmem_to_hbm [thread:$0]  %s269, 128, %s6, [#allocation4]
    $region45: #{tpu_custom_call.1} parent=1 // pred_fallthru
      _
    // Predicated region
    $region46: #{tpu_custom_call.1} parent=1 // pred_check
      _
    $region47: #{tpu_custom_call.1} parent=1 // pred_check_branch
      %273 = sbr.rel (0) target = $region49
    $region48: #{tpu_custom_call.1} parent=1 // pred_region
      %s275 = ssub.s32 128, 128
      %276 = vsyncadd [#allocation12], %s275
      %s278 = sshll.u32 [#allocation11], 4
      %s279 = int_to_ptr.vmem [resolvable:$true] %s278
      %281 = dma.vmem_to_hbm [thread:$0]  %s279, 128, %s7, [#allocation12]
    $region49: #{tpu_custom_call.1} parent=1 // pred_fallthru
      _
    // Predicated region
    $region50: #{tpu_custom_call.1} parent=1 // pred_check
      _
    $region51: #{tpu_custom_call.1} parent=1 // pred_check_branch
      %283 = sbr.rel (0) target = $region53
    $region52: #{tpu_custom_call.1} parent=1 // pred_region
      %284 = dma.done [#allocation4], 128
    $region53: #{tpu_custom_call.1} parent=1 // pred_fallthru
      _
    // Predicated region
    $region54: #{tpu_custom_call.1} parent=1 // pred_check
      _
    $region55: #{tpu_custom_call.1} parent=1 // pred_check_branch
      %286 = sbr.rel (0) target = $region57
    $region56: #{tpu_custom_call.1} parent=1 // pred_region
      %287 = dma.done [#allocation12], 128
    $region57: #{tpu_custom_call.1} parent=1 // pred_fallthru
      _
    %288 = vsyncpa [#allocation3], 1
    %289 = vsyncpa [#allocation6], 1
    %290 = vsyncpa [#allocation9], 1
    %291 = vsyncpa [#allocation4], 1
    %292 = vsyncpa [#allocation12], 1

</llo_original>
